<compile_context>
chip_gen: v7x
topology: tpu7x:2x2x1
jax: 0.10.0
libtpu: 0.0.40
codegen_flags: <defaults>
</compile_context>

<pallas_src>
import jax
import jax.numpy as jnp
import numpy as np
from jax.experimental import pallas as pl
from jax.experimental.pallas import tpu as pltpu

HW_TILE = 128  # lane-dim tile over the flattened spatial axis (multiple of 128)


# ----------------------------- Pallas kernel --------------------------------

def fused_conv_bn_relu_fc_kernel(p_ref, w_ref, b_ref, fcw_ref, fcb_ref, o_ref):
    """One (batch, hw-tile) grid step: conv matmul + folded BN + ReLU + FC partial.

    p_ref  : (1, Kp, HW_T)  bf16  im2col patches (HW in lanes)
    w_ref  : (C, Kp)        bf16  conv weight with BN scale folded in
    b_ref  : (C, 1)         f32   folded conv bias + BN shift
    fcw_ref: (O, C, HW_T)   bf16  FC weight tile (PyTorch CHW-flatten order)
    fcb_ref: (1, 1, O)      f32   FC bias
    o_ref  : (1, 1, O)      f32   per-batch output block (accumulated over hw tiles)
    """
    t = pl.program_id(1)

    # Conv as one 2D MXU matmul with f32 accumulation; output (C, HW_T) is
    # lane-dense (HW_T = 128 lanes fully used).
    acc = jnp.dot(w_ref[...], p_ref[0], preferred_element_type=jnp.float32)
    act = jnp.maximum(acc + b_ref[...], 0.0)                     # (C, HW_T) f32

    # FC partial for this hw tile.  With O=2 output features the MXU would use
    # <=2/256 of its output columns, so this contraction runs on the VPU with
    # the hw lane dim dense; no rank-4 (N, O, HW, C) temporary.
    prod = act[None, :, :] * fcw_ref[...].astype(jnp.float32)    # (O, C, HW_T)
    partial = jnp.sum(jnp.sum(prod, axis=-1), axis=-1)           # (O,)

    @pl.when(t == 0)
    def _init():
        o_ref[...] = fcb_ref[...]

    o_ref[...] += partial[None, None, :]


# ------------------------------ JAX wrappers --------------------------------

def fused_forward(patches, w_t, bias, fcw, fcb):
    N, Kp, HW = patches.shape
    C = w_t.shape[0]
    O = fcw.shape[0]
    assert HW % HW_TILE == 0
    n_hw = HW // HW_TILE

    flops = 2 * N * HW * Kp * C + 2 * N * O * C * HW
    bytes_accessed = (patches.size * 2 + w_t.size * 2 + bias.size * 4
                      + N * fcw.size * 2 + fcb.size * 4 + N * O * 4)

    out = pl.pallas_call(
        fused_conv_bn_relu_fc_kernel,
        out_shape=jax.ShapeDtypeStruct((N, 1, O), jnp.float32),
        grid_spec=pltpu.PrefetchScalarGridSpec(
            num_scalar_prefetch=0,
            grid=(N, n_hw),
            in_specs=[
                pl.BlockSpec((1, Kp, HW_TILE), lambda n, t: (n, 0, t)),
                pl.BlockSpec((C, Kp), lambda n, t: (0, 0)),
                pl.BlockSpec((C, 1), lambda n, t: (0, 0)),
                pl.BlockSpec((O, C, HW_TILE), lambda n, t: (0, 0, t)),
                pl.BlockSpec((1, 1, O), lambda n, t: (0, 0, 0)),
            ],
            out_specs=pl.BlockSpec((1, 1, O), lambda n, t: (n, 0, 0)),
        ),
        compiler_params=pltpu.CompilerParams(
            dimension_semantics=("parallel", "arbitrary"),
            vmem_limit_bytes=32 * 1024 * 1024,
        ),
        cost_estimate=pl.CostEstimate(
            flops=flops, transcendentals=0, bytes_accessed=bytes_accessed),
    )(patches, w_t, bias, fcw, fcb)
    return out.reshape(N, O)


def prepare_params(params, H, W):
    """One-time prep: fold BN into conv, permute weights, pad K, cast to bf16."""
    conv_w = params["conv_w"]                      # (Cout, Cin, 3, 3)
    Cout, Cin, kh, kw = conv_w.shape
    K = kh * kw * Cin
    Kp = ((K + 31) // 32) * 32                     # 27 -> 32 (bf16 sublane-friendly)

    eps = 1e-5
    scale = params["bn_gamma"] / jnp.sqrt(params["bn_var"] + eps)
    bias = params["bn_beta"] + scale * (params["conv_b"] - params["bn_mean"])

    # (Cout, Cin, kh, kw) -> (Cout, kh, kw, Cin) -> (Cout, K); k-order
    # (dy, dx, cin) matches the wrapper's im2col.  Fold BN scale, pad K, bf16.
    w_t = jnp.transpose(conv_w, (0, 2, 3, 1)).reshape(Cout, K)
    w_t = w_t * scale[:, None]
    w_t = jnp.pad(w_t, ((0, 0), (0, Kp - K))).astype(jnp.bfloat16)

    # PyTorch Linear weight (O, Cout*H*W) is CHW-flatten; (O, C, HW) matches the
    # kernel's (C, HW) activation tile directly (no per-forward permute).
    O = params["fc_w"].shape[0]
    fcw = params["fc_w"].reshape(O, Cout, H * W).astype(jnp.bfloat16)

    return {
        "w_t": w_t,                                          # (Cout, Kp) bf16
        "bias": bias.reshape(Cout, 1).astype(jnp.float32),   # (Cout, 1)  f32
        "fcw": fcw,                                          # (O, Cout, HW) bf16
        "fcb": params["fc_b"].reshape(1, 1, O).astype(jnp.float32),
    }


@jax.jit
def simple_net_forward(x_nchw, prep):
    """Forward pass of simpleNet: jitted glue + one fused Pallas kernel."""
    N, Cin, H, W = x_nchw.shape
    Cout, Kp = prep["w_t"].shape
    K = 9 * Cin

    # NCHW -> NHWC, zero-pad, im2col with k-order (dy, dx, cin); put HW in the
    # last (lane) dim: patches (N, Kp, H*W), bf16.
    x_nhwc = jnp.transpose(x_nchw, (0, 2, 3, 1))
    xp = jnp.pad(x_nhwc, ((0, 0), (1, 1), (1, 1), (0, 0)))
    cols = [xp[:, dy:dy + H, dx:dx + W, :] for dy in range(3) for dx in range(3)]
    patches = jnp.concatenate(cols, axis=-1).reshape(N, H * W, K)
    patches = jnp.transpose(patches, (0, 2, 1))               # (N, K, HW)
    patches = jnp.pad(patches, ((0, 0), (0, Kp - K), (0, 0)))
    patches = patches.astype(jnp.bfloat16)

    return fused_forward(patches, prep["w_t"], prep["bias"],
                         prep["fcw"], prep["fcb"])


# ------------------------------ reference (pure JAX) -------------------------

def reference_forward(x_nchw, params):
    eps = 1e-5
    y = jax.lax.conv_general_dilated(
        x_nchw, params["conv_w"], (1, 1), "SAME",
        dimension_numbers=("NCHW", "OIHW", "NCHW"),
    ) + params["conv_b"][None, :, None, None]
    y = (
        params["bn_gamma"][None, :, None, None]
        * (y - params["bn_mean"][None, :, None, None])
        / jnp.sqrt(params["bn_var"][None, :, None, None] + eps)
        + params["bn_beta"][None, :, None, None]
    )
    y = jnp.maximum(y, 0.0)
    yf = y.reshape(y.shape[0], -1)                 # NCHW flatten (PyTorch)
    return yf @ params["fc_w"].T + params["fc_b"]


# ---------------------------------- main -------------------------------------

if __name__ == "__main__":
    N, Cin, H, W = 2, 3, 16, 16
    Cout = 16

    key = jax.random.PRNGKey(0)
    kx, kw, kcb, kg, kbe, kfw, kfb = jax.random.split(key, 7)

    x = jax.random.normal(kx, (N, Cin, H, W), jnp.float32)

    params = {
        "conv_w": 0.1 * jax.random.normal(kw, (Cout, Cin, 3, 3), jnp.float32),
        "conv_b": 0.1 * jax.random.normal(kcb, (Cout,), jnp.float32),
        "bn_gamma": 1.0 + 0.1 * jax.random.normal(kg, (Cout,), jnp.float32),
        "bn_beta": 0.1 * jax.random.normal(kbe, (Cout,), jnp.float32),
        "bn_mean": jnp.zeros((Cout,), jnp.float32),
        "bn_var": jnp.ones((Cout,), jnp.float32),
        # PyTorch Linear: (out_features, in_features), CHW-flatten ordering
        "fc_w": 0.01 * jax.random.normal(kfw, (2, Cout * H * W), jnp.float32),
        "fc_b": 0.01 * jax.random.normal(kfb, (2,), jnp.float32),
    }

    prep = prepare_params(params, H, W)            # one-time hoisted prep

    out = simple_net_forward(x, prep)
    out = jax.block_until_ready(out)

    ref = jax.block_until_ready(reference_forward(x, params))
    # bf16 matmul operands (f32 accumulation) -> loosened tolerance vs f32 ref.
    np.testing.assert_allclose(np.asarray(out), np.asarray(ref),
                               rtol=2e-2, atol=1e-2)
    assert out.shape == (N, 2)

    print("KERNEL_OK")
</pallas_src>

<mosaic_0001>
module attributes {stable_mosaic.version = 11 : i64} {
  func.func @fused_conv_bn_relu_fc_kernel(%arg0: i32, %arg1: i32, %arg2: memref<1x32x128xbf16, #tpu.memory_space<vmem>>, %arg3: memref<16x32xbf16, #tpu.memory_space<vmem>>, %arg4: memref<16x1xf32, #tpu.memory_space<vmem>>, %arg5: memref<2x16x128xbf16, #tpu.memory_space<vmem>>, %arg6: memref<1x1x2xf32, #tpu.memory_space<vmem>>, %arg7: memref<1x1x2xf32, #tpu.memory_space<vmem>>) attributes {dimension_semantics = [#tpu.dimension_semantics<parallel>, #tpu.dimension_semantics<arbitrary>], iteration_bounds = array<i64: 2, 2>, scalar_prefetch = 0 : i64, scratch_operands = 0 : i64, tpu.core_type = #tpu.core_type<tc>, window_params = [{transform_indices = @transform_0, window_bounds = array<i64: 1, 32, 128>}, {pipeline_mode = #tpu.pipeline_mode<synchronous>, transform_indices = @transform_1, window_bounds = array<i64: 16, 32>}, {pipeline_mode = #tpu.pipeline_mode<synchronous>, transform_indices = @transform_2, window_bounds = array<i64: 16, 1>}, {transform_indices = @transform_3, window_bounds = array<i64: 2, 16, 128>}, {pipeline_mode = #tpu.pipeline_mode<synchronous>, transform_indices = @transform_4, window_bounds = array<i64: 1, 1, 2>}, {transform_indices = @transform_5, window_bounds = array<i64: 1, 1, 2>}]} {
    %c0 = arith.constant 0 : index
    %c0_0 = arith.constant 0 : index
    %0 = vector.load %arg3[%c0, %c0_0] : memref<16x32xbf16, #tpu.memory_space<vmem>>, vector<16x32xbf16>
    %c0_1 = arith.constant 0 : index
    %c0_2 = arith.constant 0 : index
    %c0_3 = arith.constant 0 : index
    %1 = vector.load %arg2[%c0_1, %c0_2, %c0_3] : memref<1x32x128xbf16, #tpu.memory_space<vmem>>, vector<1x32x128xbf16>
    %2 = vector.shape_cast %1 : vector<1x32x128xbf16> to vector<32x128xbf16>
    %cst = arith.constant dense<0.000000e+00> : vector<16x128xf32>
    %3 = tpu.matmul %0, %2, %cst {dimension_numbers = #tpu.dot_dimension_numbers<[1], [0], [0], [1], [0, 0, 1, 1], [], []>} : vector<16x32xbf16>, vector<32x128xbf16>, vector<16x128xf32> -> vector<16x128xf32>
    %c0_4 = arith.constant 0 : index
    %c0_5 = arith.constant 0 : index
    %4 = vector.load %arg4[%c0_4, %c0_5] : memref<16x1xf32, #tpu.memory_space<vmem>>, vector<16x1xf32>
    %5 = vector.broadcast %4 : vector<16x1xf32> to vector<16x128xf32>
    %6 = arith.addf %3, %5 : vector<16x128xf32>
    %cst_6 = arith.constant 0.000000e+00 : f32
    %7 = vector.broadcast %cst_6 : f32 to vector<16x128xf32>
    %8 = arith.maximumf %6, %7 : vector<16x128xf32>
    %9 = vector.shape_cast %8 : vector<16x128xf32> to vector<1x16x128xf32>
    %c0_7 = arith.constant 0 : index
    %c0_8 = arith.constant 0 : index
    %c0_9 = arith.constant 0 : index
    %10 = vector.load %arg5[%c0_7, %c0_8, %c0_9] : memref<2x16x128xbf16, #tpu.memory_space<vmem>>, vector<2x16x128xbf16>
    %11 = arith.extf %10 : vector<2x16x128xbf16> to vector<2x16x128xf32>
    %12 = vector.broadcast %9 : vector<1x16x128xf32> to vector<2x16x128xf32>
    %13 = arith.mulf %12, %11 : vector<2x16x128xf32>
    %cst_10 = arith.constant dense<0.000000e+00> : vector<2x16xf32>
    %14 = vector.multi_reduction <add>, %13, %cst_10 [2] : vector<2x16x128xf32> to vector<2x16xf32>
    %cst_11 = arith.constant dense<0.000000e+00> : vector<2xf32>
    %15 = vector.multi_reduction <add>, %14, %cst_11 [1] : vector<2x16xf32> to vector<2xf32>
    %c0_i32 = arith.constant 0 : i32
    %16 = arith.cmpi eq, %arg1, %c0_i32 : i32
    %17 = arith.extui %16 : i1 to i32
    %c0_i32_12 = arith.constant 0 : i32
    %18 = arith.cmpi ne, %17, %c0_i32_12 : i32
    scf.if %18 {
      %c0_19 = arith.constant 0 : index
      %c0_20 = arith.constant 0 : index
      %c0_21 = arith.constant 0 : index
      %23 = vector.load %arg6[%c0_19, %c0_20, %c0_21] : memref<1x1x2xf32, #tpu.memory_space<vmem>>, vector<1x1x2xf32>
      %c0_22 = arith.constant 0 : index
      %c0_23 = arith.constant 0 : index
      %c0_24 = arith.constant 0 : index
      %24 = vector.load %arg7[%c0_22, %c0_23, %c0_24] : memref<1x1x2xf32, #tpu.memory_space<vmem>>, vector<1x1x2xf32>
      tpu.vector_store %arg7[%c0_22, %c0_23, %c0_24], %23 {strides = array<i32>} : memref<1x1x2xf32, #tpu.memory_space<vmem>>, vector<1x1x2xf32>,
    } else {
    }
    %c0_13 = arith.constant 0 : index
    %c0_14 = arith.constant 0 : index
    %c0_15 = arith.constant 0 : index
    %19 = vector.load %arg7[%c0_13, %c0_14, %c0_15] : memref<1x1x2xf32, #tpu.memory_space<vmem>>, vector<1x1x2xf32>
    %20 = vector.shape_cast %15 : vector<2xf32> to vector<1x1x2xf32>
    %21 = arith.addf %19, %20 : vector<1x1x2xf32>
    %c0_16 = arith.constant 0 : index
    %c0_17 = arith.constant 0 : index
    %c0_18 = arith.constant 0 : index
    %22 = vector.load %arg7[%c0_16, %c0_17, %c0_18] : memref<1x1x2xf32, #tpu.memory_space<vmem>>, vector<1x1x2xf32>
    tpu.vector_store %arg7[%c0_16, %c0_17, %c0_18], %21 {strides = array<i32>} : memref<1x1x2xf32, #tpu.memory_space<vmem>>, vector<1x1x2xf32>,
    return
  }
  func.func @transform_0(%arg0: i32, %arg1: i32) -> (i32, i32, i32) {
    %c0_i32 = arith.constant 0 : i32
    %c0_i32_0 = arith.constant 0 : i32
    return %arg0, %c0_i32, %arg1 : i32, i32, i32
  }
  func.func @transform_1(%arg0: i32, %arg1: i32) -> (i32, i32) {
    %c0_i32 = arith.constant 0 : i32
    %c0_i32_0 = arith.constant 0 : i32
    %c0_i32_1 = arith.constant 0 : i32
    return %c0_i32, %c0_i32_0 : i32, i32
  }
  func.func @transform_2(%arg0: i32, %arg1: i32) -> (i32, i32) {
    %c0_i32 = arith.constant 0 : i32
    %c0_i32_0 = arith.constant 0 : i32
    %c0_i32_1 = arith.constant 0 : i32
    return %c0_i32, %c0_i32_0 : i32, i32
  }
  func.func @transform_3(%arg0: i32, %arg1: i32) -> (i32, i32, i32) {
    %c0_i32 = arith.constant 0 : i32
    %c0_i32_0 = arith.constant 0 : i32
    %c0_i32_1 = arith.constant 0 : i32
    return %c0_i32, %c0_i32_0, %arg1 : i32, i32, i32
  }
  func.func @transform_4(%arg0: i32, %arg1: i32) -> (i32, i32, i32) {
    %c0_i32 = arith.constant 0 : i32
    %c0_i32_0 = arith.constant 0 : i32
    %c0_i32_1 = arith.constant 0 : i32
    %c0_i32_2 = arith.constant 0 : i32
    return %c0_i32, %c0_i32_0, %c0_i32_1 : i32, i32, i32
  }
  func.func @transform_5(%arg0: i32, %arg1: i32) -> (i32, i32, i32) {
    %c0_i32 = arith.constant 0 : i32
    %c0_i32_0 = arith.constant 0 : i32
    %c0_i32_1 = arith.constant 0 : i32
    return %arg0, %c0_i32, %c0_i32_0 : i32, i32, i32
  }
}

</mosaic_0001>

<llo_original>
// kernel: simple_net_forward.1
$region0: #{simple_net_forward.1}
  #allocation0 [shape = 'u32[]', space=smem, size = 0x4, offset = 0x4, fixed_abs, tag = 'smem constant byte address 0x4 - core index']
  #allocation1 [shape = 'u32[144,128]{1,0:T(1,128)}', space=vmem, size = 0x12000, scoped, tag = 'internal scratch']
  %s0 = inlined_call_operand.vmem [shape: bf16[2,32,256], index: 0, kind: input, shape index: {}]
  %s1 = inlined_call_operand.vmem [shape: bf16[16,32], index: 1, kind: input, shape index: {}]
  %s2 = inlined_call_operand.vmem [shape: f32[16,1], index: 2, kind: input, shape index: {}]
  %s3 = inlined_call_operand.vmem [shape: bf16[2,16,256], index: 3, kind: input, shape index: {}]
  %s4 = inlined_call_operand.vmem [shape: f32[1,1,2], index: 4, kind: input, shape index: {}]
  %s5 = inlined_call_operand.hbm [shape: f32[2,1,2], index: 5, kind: output, shape index: {}]
  %s6 = sld [smem:[#allocation0]]
  $region139: #{simple_net_forward.1} parent=0
    _
  %s8 = ssub.s32 1, %s6
  %s9 = scalar_select 0, %s8, %s6
  $region1: #{simple_net_forward.1} parent=0
    #allocation2 [shape = 'u8[16384]{0}', space=vmem, size = 0x4000, scoped, tag = 'input window, operand 0']
    #allocation3 [shape = 'u8[16384]{0}', space=vmem, size = 0x4000, scoped, tag = 'input window, operand 3']
    #allocation4 [shape = 'u8[1024]{0}', space=vmem, size = 0x400, scoped, tag = 'output window, operand 0']
    #allocation5 [shape = 's32[2]{0}', space=sflag, size = 0x8, scoped, tag = 'scoped memory for simple_net_forward.1']
    %10 = vsyncpa [#allocation5], 0
    %s11 = scalar_lea.sflag [#allocation5], 1
    %12 = vsyncpa %s11, 0
    loop: start=0, step=1, limit=6
    $region2: #{simple_net_forward.1} parent=1 // loop_pre_header
      _
    $region3: #{simple_net_forward.1} parent=1 // loop_header
      %s14 = sphi 0, %s18
      %p15 = scmp.ge.s32.totalorder %s14, 6
      %s21 = sphi 0, %s33
      %s22 = sphi 0, %s29
      %s23 = sphi 0, %s21
      %s24 = sphi 0, %s22
      %s25 = sphi 0, %s23
      %s26 = sphi 0, %s24
      %s38 = sphi 0, %s40
      %s41 = sphi 0, %s38
      %s42 = sphi 0, %s41
      %s58 = sphi 0, %s42
      %s62 = sphi 0, %s62
      %s64 = sphi 0, %s62
      %s65 = sphi 0, %s64
      %s79 = sphi 0, %s65
      %s83 = sphi 0, %s83
      %s85 = sphi 0, %s83
      %s86 = sphi 0, %s85
      %s100 = sphi 0, %s86
      %s106 = sphi 0, %s108
      %s109 = sphi 0, %s106
      %s110 = sphi 0, %s109
      %s126 = sphi 0, %s110
      %s130 = sphi 0, %s130
      %s132 = sphi 0, %s130
      %s133 = sphi 0, %s132
      %s147 = sphi 0, %s133
      %s153 = sphi 0, %s155
      %s156 = sphi 0, %s153
      %s157 = sphi 0, %s156
      %s173 = sphi 0, %s157
    $region4: #{simple_net_forward.1} parent=1 // loop_header_branch
      %17 = sbr.rel (%p15) target = $region8
    $region5: #{simple_net_forward.1} parent=1 // loop_body
      %s19 = ssub.s32 %s14, 1
      %s20 = ssub.s32 %s14, 2
      %s27 = sadd.s32 1, %s22
      %p28 = scmp.ge.s32.totalorder %s27, 2
      %s29 = scalar_select %p28, 0, %s27
      %s30 = sadd.s32 1, %s21
      %s31 = scalar_select %p28, %s30, %s21
      %p32 = scmp.ge.s32.totalorder %s31, 2
      %s33 = scalar_select %p32, 0, %s31
      %s34 = ssub.s32 %s21, %s33
      %s35 = ssub.s32 %s22, %s29
      %s36 = sor.u32 %s34, %s35
      %p37 = scmp.eq.s32.totalorder %s36, 0
      %s39 = sadd.s32 %s38, 1
      %s40 = scalar_select %p37, %s38, %s39
      %p43 = pneg %p37
      %p44 = scmp.eq.s32.totalorder %s14, 3
      %p45 = por %p43, %p44
      %p46 = scmp.ne.s32.totalorder %s38, %s41
      %p47 = scmp.eq.s32.totalorder %s14, 0
      %p48 = por %p46, %p47
      %p49 = scmp.ne.s32.totalorder %s38, %s41
      %p50 = scmp.eq.s32.totalorder %s19, 3
      %p51 = por %p49, %p50
      %p52 = scmp.ne.s32.totalorder %s41, %s42
      %p53 = scmp.eq.s32.totalorder %s19, 0
      %p54 = por %p52, %p53
      %p55 = scmp.ne.s32.totalorder %s41, %s42
      %p56 = scmp.eq.s32.totalorder %s20, 3
      %p57 = por %p55, %p56
      %p59 = scmp.ne.s32.totalorder %s42, %s58
      %p60 = scmp.eq.s32.totalorder %s20, 0
      %p61 = por %p59, %p60
      %s63 = sadd.s32 %s62, 1
      %p66 = scmp.eq.s32.totalorder %s14, 3
      %p67 = scmp.ne.s32.totalorder %s62, %s64
      %p68 = scmp.eq.s32.totalorder %s14, 0
      %p69 = por %p67, %p68
      %p70 = scmp.ne.s32.totalorder %s62, %s64
      %p71 = scmp.eq.s32.totalorder %s19, 3
      %p72 = por %p70, %p71
      %p73 = scmp.ne.s32.totalorder %s64, %s65
      %p74 = scmp.eq.s32.totalorder %s19, 0
      %p75 = por %p73, %p74
      %p76 = scmp.ne.s32.totalorder %s64, %s65
      %p77 = scmp.eq.s32.totalorder %s20, 3
      %p78 = por %p76, %p77
      %p80 = scmp.ne.s32.totalorder %s65, %s79
      %p81 = scmp.eq.s32.totalorder %s20, 0
      %p82 = por %p80, %p81
      %s84 = sadd.s32 %s83, 1
      %p87 = scmp.eq.s32.totalorder %s14, 3
      %p88 = scmp.ne.s32.totalorder %s83, %s85
      %p89 = scmp.eq.s32.totalorder %s14, 0
      %p90 = por %p88, %p89
      %p91 = scmp.ne.s32.totalorder %s83, %s85
      %p92 = scmp.eq.s32.totalorder %s19, 3
      %p93 = por %p91, %p92
      %p94 = scmp.ne.s32.totalorder %s85, %s86
      %p95 = scmp.eq.s32.totalorder %s19, 0
      %p96 = por %p94, %p95
      %p97 = scmp.ne.s32.totalorder %s85, %s86
      %p98 = scmp.eq.s32.totalorder %s20, 3
      %p99 = por %p97, %p98
      %p101 = scmp.ne.s32.totalorder %s86, %s100
      %p102 = scmp.eq.s32.totalorder %s20, 0
      %p103 = por %p101, %p102
      %s104 = ssub.s32 %s22, %s29
      %p105 = scmp.eq.s32.totalorder %s104, 0
      %s107 = sadd.s32 %s106, 1
      %s108 = scalar_select %p105, %s106, %s107
      %p111 = pneg %p105
      %p112 = scmp.eq.s32.totalorder %s14, 3
      %p113 = por %p111, %p112
      %p114 = scmp.ne.s32.totalorder %s106, %s109
      %p115 = scmp.eq.s32.totalorder %s14, 0
      %p116 = por %p114, %p115
      %p117 = scmp.ne.s32.totalorder %s106, %s109
      %p118 = scmp.eq.s32.totalorder %s19, 3
      %p119 = por %p117, %p118
      %p120 = scmp.ne.s32.totalorder %s109, %s110
      %p121 = scmp.eq.s32.totalorder %s19, 0
      %p122 = por %p120, %p121
      %p123 = scmp.ne.s32.totalorder %s109, %s110
      %p124 = scmp.eq.s32.totalorder %s20, 3
      %p125 = por %p123, %p124
      %p127 = scmp.ne.s32.totalorder %s110, %s126
      %p128 = scmp.eq.s32.totalorder %s20, 0
      %p129 = por %p127, %p128
      %s131 = sadd.s32 %s130, 1
      %p134 = scmp.eq.s32.totalorder %s14, 3
      %p135 = scmp.ne.s32.totalorder %s130, %s132
      %p136 = scmp.eq.s32.totalorder %s14, 0
      %p137 = por %p135, %p136
      %p138 = scmp.ne.s32.totalorder %s130, %s132
      %p139 = scmp.eq.s32.totalorder %s19, 3
      %p140 = por %p138, %p139
      %p141 = scmp.ne.s32.totalorder %s132, %s133
      %p142 = scmp.eq.s32.totalorder %s19, 0
      %p143 = por %p141, %p142
      %p144 = scmp.ne.s32.totalorder %s132, %s133
      %p145 = scmp.eq.s32.totalorder %s20, 3
      %p146 = por %p144, %p145
      %p148 = scmp.ne.s32.totalorder %s133, %s147
      %p149 = scmp.eq.s32.totalorder %s20, 0
      %p150 = por %p148, %p149
      %s151 = ssub.s32 %s21, %s33
      %p152 = scmp.eq.s32.totalorder %s151, 0
      %s154 = sadd.s32 %s153, 1
      %s155 = scalar_select %p152, %s153, %s154
      %p158 = pneg %p152
      %p159 = scmp.eq.s32.totalorder %s14, 3
      %p160 = por %p158, %p159
      %p161 = scmp.ne.s32.totalorder %s153, %s156
      %p162 = scmp.eq.s32.totalorder %s14, 0
      %p163 = por %p161, %p162
      %p164 = scmp.ne.s32.totalorder %s153, %s156
      %p165 = scmp.eq.s32.totalorder %s19, 3
      %p166 = por %p164, %p165
      %p167 = scmp.ne.s32.totalorder %s156, %s157
      %p168 = scmp.eq.s32.totalorder %s19, 0
      %p169 = por %p167, %p168
      %p170 = scmp.ne.s32.totalorder %s156, %s157
      %p171 = scmp.eq.s32.totalorder %s20, 3
      %p172 = por %p170, %p171
      %p174 = scmp.ne.s32.totalorder %s157, %s173
      %p175 = scmp.eq.s32.totalorder %s20, 0
      %p176 = por %p174, %p175
      %p177 = scmp.le.s32.totalorder 1, %s14
      %p178 = scmp.lt.s32.totalorder %s14, 5
      %p179 = pnand %p177, %p178
      %p180 = pneg %p179
      // Predicated region
      $region9: #{simple_net_forward.1} parent=5 // pred_check
        _
      $region10: #{simple_net_forward.1} parent=5 // pred_check_branch
        %182 = sbr.rel (%p179) target = $region12
      $region11: #{simple_net_forward.1} parent=5 // pred_region
        %s183 = ssub.s32 %s14, 1
        // Predicated region
        $region13: #{simple_net_forward.1} parent=11 // pred_check
          %p184 = pneg %p75
        $region14: #{simple_net_forward.1} parent=11 // pred_check_branch
          %186 = sbr.rel (%p184) target = $region16
        $region15: #{simple_net_forward.1} parent=11 // pred_region
          _
        $region16: #{simple_net_forward.1} parent=11 // pred_fallthru
          _
        // Predicated region
        $region17: #{simple_net_forward.1} parent=11 // pred_check
          %p187 = pneg %p96
        $region18: #{simple_net_forward.1} parent=11 // pred_check_branch
          %189 = sbr.rel (%p187) target = $region20
        $region19: #{simple_net_forward.1} parent=11 // pred_region
          _
        $region20: #{simple_net_forward.1} parent=11 // pred_fallthru
          _
        // Predicated region
        $region21: #{simple_net_forward.1} parent=11 // pred_check
          %p190 = pneg %p143
        $region22: #{simple_net_forward.1} parent=11 // pred_check_branch
          %192 = sbr.rel (%p190) target = $region24
        $region23: #{simple_net_forward.1} parent=11 // pred_region
          _
        $region24: #{simple_net_forward.1} parent=11 // pred_fallthru
          _
      $region12: #{simple_net_forward.1} parent=5 // pred_fallthru
        _
      %p193 = scmp.lt.s32.totalorder %s14, 4
      // Predicated region
      $region25: #{simple_net_forward.1} parent=5 // pred_check
        %p194 = pneg %p193
      $region26: #{simple_net_forward.1} parent=5 // pred_check_branch
        %196 = sbr.rel (%p194) target = $region28
      $region27: #{simple_net_forward.1} parent=5 // pred_region
        // Predicated region
        $region29: #{simple_net_forward.1} parent=27 // pred_check
          %p197 = pneg %p48
        $region30: #{simple_net_forward.1} parent=27 // pred_check_branch
          %199 = sbr.rel (%p197) target = $region32
        $region31: #{simple_net_forward.1} parent=27 // pred_region
          %s200 = sand.u32 %s38, 1
          %s201 = sand.u32 %s38, 1
          %s202 = smul.addr %s201, 16
          %s203 = scalar_lea.vmem [#allocation2], %s202
          %s204 = smul.addr %s21, 8
          %s205 = sadd.s32 %s22, %s204
          %s206 = smul.addr %s205, 4
          %s207 = scalar_lea.vmem %s0, %s206
          // Predicated region
          $region33: #{simple_net_forward.1} parent=31 // pred_check
            _
          $region34: #{simple_net_forward.1} parent=31 // pred_check_branch
            %209 = sbr.rel (0) target = $region36
          $region35: #{simple_net_forward.1} parent=31 // pred_region
            // Predicated region
            $region37: #{simple_net_forward.1} parent=35 // pred_check
              _
            $region38: #{simple_net_forward.1} parent=35 // pred_check_branch
              %211 = sbr.rel target = $region40
            $region39: #{simple_net_forward.1} parent=35 // pred_region
              // Predicated region
              $region52: #{simple_net_forward.1} parent=39 // pred_check
                _
              $region53: #{simple_net_forward.1} parent=39 // pred_check_branch
                %232 = sbr.rel (0) target = $region55
              $region54: #{simple_net_forward.1} parent=39 // pred_region
                loop: start=0, step=1, limit=1
                $region56: #{simple_net_forward.1} parent=54 // loop_pre_header
                  _
                $region57: #{simple_net_forward.1} parent=54 // loop_header
                  %s234 = sphi 0, %s238
                  %p235 = scmp.ge.s32.totalorder %s234, 1
                  %s239 = sphi %s207, %s207
                  %s240 = sphi %s203, %s203
                $region58: #{simple_net_forward.1} parent=54 // loop_header_branch
                  %237 = sbr.rel (%p235) target = $region62
                $region59: #{simple_net_forward.1} parent=54 // loop_body
                  _
                $region60: #{simple_net_forward.1} parent=54 // loop_footer
                  %s238 = sadd.s32 1, %s234
                $region61: #{simple_net_forward.1} parent=54 // loop_footer_branch
                  %233 = sbr.rel target = $region57
                $region62: #{simple_net_forward.1} parent=54 // loop_exit
                  _
                loop: start=0, step=1, limit=1
                $region63: #{simple_net_forward.1} parent=54 // loop_pre_header
                  _
                $region64: #{simple_net_forward.1} parent=54 // loop_header
                  %s243 = sphi 0, %s247
                  %p244 = scmp.ge.s32.totalorder %s243, 1
                  %s248 = sphi %s207, %s207
                  %s249 = sphi %s203, %s203
                $region65: #{simple_net_forward.1} parent=54 // loop_header_branch
                  %246 = sbr.rel (%p244) target = $region69
                $region66: #{simple_net_forward.1} parent=54 // loop_body
                  %v250 = vld [vmem:[%s248] sm:$0xf]
                  %251 = vst [vmem:[%s249] sm:$0xf] %v250
                  %v252 = vld [vmem:[%s248 + $0x8] sm:$0xf]
                  %253 = vst [vmem:[%s249 + $0x4] sm:$0xf] %v252
                  %v254 = vld [vmem:[%s248 + $0x10] sm:$0xf]
                  %255 = vst [vmem:[%s249 + $0x8] sm:$0xf] %v254
                  %v256 = vld [vmem:[%s248 + $0x18] sm:$0xf]
                  %257 = vst [vmem:[%s249 + $0xc] sm:$0xf] %v256
                $region67: #{simple_net_forward.1} parent=54 // loop_footer
                  %s247 = sadd.s32 1, %s243
                $region68: #{simple_net_forward.1} parent=54 // loop_footer_branch
                  %242 = sbr.rel target = $region64
                $region69: #{simple_net_forward.1} parent=54 // loop_exit
                  _
              $region55: #{simple_net_forward.1} parent=39 // pred_fallthru
                _
            $region40: #{simple_net_forward.1} parent=35 // pred_fallthru
              _
            // Predicated region
            $region41: #{simple_net_forward.1} parent=35 // pred_check
              _
            $region42: #{simple_net_forward.1} parent=35 // pred_check_branch
              %213 = sbr.rel (0) target = $region44
            $region43: #{simple_net_forward.1} parent=35 // pred_region
              loop: start=0, step=1, limit=1
              $region45: #{simple_net_forward.1} parent=43 // loop_pre_header
                _
              $region46: #{simple_net_forward.1} parent=43 // loop_header
                %s216 = sphi 0, %s220
                %p217 = scmp.ge.s32.totalorder %s216, 1
                %s221 = sphi %s207, %s207
                %s222 = sphi %s203, %s203
              $region47: #{simple_net_forward.1} parent=43 // loop_header_branch
                %219 = sbr.rel (%p217) target = $region51
              $region48: #{simple_net_forward.1} parent=43 // loop_body
                %v223 = vld [vmem:[%s221] sm:$0xf]
                %224 = vst [vmem:[%s222] sm:$0xf] %v223
                %v225 = vld [vmem:[%s221 + $0x8] sm:$0xf]
                %226 = vst [vmem:[%s222 + $0x4] sm:$0xf] %v225
                %v227 = vld [vmem:[%s221 + $0x10] sm:$0xf]
                %228 = vst [vmem:[%s222 + $0x8] sm:$0xf] %v227
                %v229 = vld [vmem:[%s221 + $0x18] sm:$0xf]
                %230 = vst [vmem:[%s222 + $0xc] sm:$0xf] %v229
              $region49: #{simple_net_forward.1} parent=43 // loop_footer
                %s220 = sadd.s32 1, %s216
              $region50: #{simple_net_forward.1} parent=43 // loop_footer_branch
                %215 = sbr.rel target = $region46
              $region51: #{simple_net_forward.1} parent=43 // loop_exit
                _
            $region44: #{simple_net_forward.1} parent=35 // pred_fallthru
              _
          $region36: #{simple_net_forward.1} parent=31 // pred_fallthru
            _
          %258 = vnop
        $region32: #{simple_net_forward.1} parent=27 // pred_fallthru
          _
        // Predicated region
        $region70: #{simple_net_forward.1} parent=27 // pred_check
          %p259 = pneg %p116
        $region71: #{simple_net_forward.1} parent=27 // pred_check_branch
          %261 = sbr.rel (%p259) target = $region73
        $region72: #{simple_net_forward.1} parent=27 // pred_region
          %s262 = sand.u32 %s106, 1
          %s263 = sand.u32 %s106, 1
          %s264 = smul.addr %s263, 16
          %s265 = scalar_lea.vmem [#allocation3], %s264
          %s266 = smul.addr %s22, 4
          %s267 = scalar_lea.vmem %s3, %s266
          // Predicated region
          $region74: #{simple_net_forward.1} parent=72 // pred_check
            _
          $region75: #{simple_net_forward.1} parent=72 // pred_check_branch
            %269 = sbr.rel (0) target = $region77
          $region76: #{simple_net_forward.1} parent=72 // pred_region
            // Predicated region
            $region78: #{simple_net_forward.1} parent=76 // pred_check
              _
            $region79: #{simple_net_forward.1} parent=76 // pred_check_branch
              %271 = sbr.rel target = $region81
            $region80: #{simple_net_forward.1} parent=76 // pred_region
              // Predicated region
              $region93: #{simple_net_forward.1} parent=80 // pred_check
                _
              $region94: #{simple_net_forward.1} parent=80 // pred_check_branch
                %292 = sbr.rel (0) target = $region96
              $region95: #{simple_net_forward.1} parent=80 // pred_region
                loop: start=0, step=1, limit=1
                $region97: #{simple_net_forward.1} parent=95 // loop_pre_header
                  _
                $region98: #{simple_net_forward.1} parent=95 // loop_header
                  %s294 = sphi 0, %s298
                  %p295 = scmp.ge.s32.totalorder %s294, 1
                  %s299 = sphi %s267, %s267
                  %s300 = sphi %s265, %s265
                $region99: #{simple_net_forward.1} parent=95 // loop_header_branch
                  %297 = sbr.rel (%p295) target = $region103
                $region100: #{simple_net_forward.1} parent=95 // loop_body
                  _
                $region101: #{simple_net_forward.1} parent=95 // loop_footer
                  %s298 = sadd.s32 1, %s294
                $region102: #{simple_net_forward.1} parent=95 // loop_footer_branch
                  %293 = sbr.rel target = $region98
                $region103: #{simple_net_forward.1} parent=95 // loop_exit
                  _
                loop: start=0, step=1, limit=1
                $region104: #{simple_net_forward.1} parent=95 // loop_pre_header
                  _
                $region105: #{simple_net_forward.1} parent=95 // loop_header
                  %s303 = sphi 0, %s307
                  %p304 = scmp.ge.s32.totalorder %s303, 1
                  %s308 = sphi %s267, %s267
                  %s309 = sphi %s265, %s265
                $region106: #{simple_net_forward.1} parent=95 // loop_header_branch
                  %306 = sbr.rel (%p304) target = $region110
                $region107: #{simple_net_forward.1} parent=95 // loop_body
                  %v310 = vld [vmem:[%s308] sm:$0xf]
                  %311 = vst [vmem:[%s309] sm:$0xf] %v310
                  %v312 = vld [vmem:[%s308 + $0x8] sm:$0xf]
                  %313 = vst [vmem:[%s309 + $0x4] sm:$0xf] %v312
                  %v314 = vld [vmem:[%s308 + $0x10] sm:$0xf]
                  %315 = vst [vmem:[%s309 + $0x8] sm:$0xf] %v314
                  %v316 = vld [vmem:[%s308 + $0x18] sm:$0xf]
                  %317 = vst [vmem:[%s309 + $0xc] sm:$0xf] %v316
                $region108: #{simple_net_forward.1} parent=95 // loop_footer
                  %s307 = sadd.s32 1, %s303
                $region109: #{simple_net_forward.1} parent=95 // loop_footer_branch
                  %302 = sbr.rel target = $region105
                $region110: #{simple_net_forward.1} parent=95 // loop_exit
                  _
              $region96: #{simple_net_forward.1} parent=80 // pred_fallthru
                _
            $region81: #{simple_net_forward.1} parent=76 // pred_fallthru
              _
            // Predicated region
            $region82: #{simple_net_forward.1} parent=76 // pred_check
              _
            $region83: #{simple_net_forward.1} parent=76 // pred_check_branch
              %273 = sbr.rel (0) target = $region85
            $region84: #{simple_net_forward.1} parent=76 // pred_region
              loop: start=0, step=1, limit=1
              $region86: #{simple_net_forward.1} parent=84 // loop_pre_header
                _
              $region87: #{simple_net_forward.1} parent=84 // loop_header
                %s276 = sphi 0, %s280
                %p277 = scmp.ge.s32.totalorder %s276, 1
                %s281 = sphi %s267, %s267
                %s282 = sphi %s265, %s265
              $region88: #{simple_net_forward.1} parent=84 // loop_header_branch
                %279 = sbr.rel (%p277) target = $region92
              $region89: #{simple_net_forward.1} parent=84 // loop_body
                %v283 = vld [vmem:[%s281] sm:$0xf]
                %284 = vst [vmem:[%s282] sm:$0xf] %v283
                %v285 = vld [vmem:[%s281 + $0x8] sm:$0xf]
                %286 = vst [vmem:[%s282 + $0x4] sm:$0xf] %v285
                %v287 = vld [vmem:[%s281 + $0x10] sm:$0xf]
                %288 = vst [vmem:[%s282 + $0x8] sm:$0xf] %v287
                %v289 = vld [vmem:[%s281 + $0x18] sm:$0xf]
                %290 = vst [vmem:[%s282 + $0xc] sm:$0xf] %v289
              $region90: #{simple_net_forward.1} parent=84 // loop_footer
                %s280 = sadd.s32 1, %s276
              $region91: #{simple_net_forward.1} parent=84 // loop_footer_branch
                %275 = sbr.rel target = $region87
              $region92: #{simple_net_forward.1} parent=84 // loop_exit
                _
            $region85: #{simple_net_forward.1} parent=76 // pred_fallthru
              _
          $region77: #{simple_net_forward.1} parent=72 // pred_fallthru
            _
          %318 = vnop
        $region73: #{simple_net_forward.1} parent=27 // pred_fallthru
          _
      $region28: #{simple_net_forward.1} parent=5 // pred_fallthru
        _
      %p319 = scmp.le.s32.totalorder 1, %s14
      %p320 = scmp.lt.s32.totalorder %s14, 5
      %p321 = pnand %p319, %p320
      %p322 = pneg %p321
      // Predicated region
      $region111: #{simple_net_forward.1} parent=5 // pred_check
        _
      $region112: #{simple_net_forward.1} parent=5 // pred_check_branch
        %324 = sbr.rel (%p321) target = $region114
      $region113: #{simple_net_forward.1} parent=5 // pred_region
        %s325 = ssub.s32 %s14, 1
        %s326 = sand.u32 %s41, 1
        %s327 = sand.u32 %s41, 1
        %s328 = smul.addr %s327, 16
        %s329 = scalar_lea.vmem [#allocation2], %s328
        // Predicated region
        $region115: #{simple_net_forward.1} parent=113 // pred_check
          %p330 = pneg %p54
        $region116: #{simple_net_forward.1} parent=113 // pred_check_branch
          %332 = sbr.rel (%p330) target = $region118
        $region117: #{simple_net_forward.1} parent=113 // pred_region
          _
        $region118: #{simple_net_forward.1} parent=113 // pred_fallthru
          _
        %s333 = sand.u32 %s109, 1
        %s334 = sand.u32 %s109, 1
        %s335 = smul.addr %s334, 16
        %s336 = scalar_lea.vmem [#allocation3], %s335
        // Predicated region
        $region119: #{simple_net_forward.1} parent=113 // pred_check
          %p337 = pneg %p122
        $region120: #{simple_net_forward.1} parent=113 // pred_check_branch
          %339 = sbr.rel (%p337) target = $region122
        $region121: #{simple_net_forward.1} parent=113 // pred_region
          _
        $region122: #{simple_net_forward.1} parent=113 // pred_fallthru
          _
        %s340 = sand.u32 %s41, 1
        %s341 = sand.u32 %s41, 1
        %s342 = smul.addr %s341, 16
        %s343 = scalar_lea.vmem [#allocation2], %s342
        %p344 = pneg %p54
        %p345 = pneg %p51
        %p346 = pneg %p75
        %p347 = pneg %p72
        %p348 = pneg %p96
        %p349 = pneg %p93
        %s350 = sand.u32 %s109, 1
        %s351 = sand.u32 %s109, 1
        %s352 = smul.addr %s351, 16
        %s353 = scalar_lea.vmem [#allocation3], %s352
        %p354 = pneg %p122
        %p355 = pneg %p119
        %p356 = pneg %p143
        %p357 = pneg %p140
        %p358 = pneg %p169
        %p359 = pneg %p166
        %s360 = sand.u32 %s156, 1
        %s361 = scalar_lea.sflag [#allocation5], %s360
        %s362 = sand.u32 %s156, 1
        %s363 = scalar_lea.vmem [#allocation4], %s362
        %v365 = vld [vmem:[%s1] sm:$0xf]
        %v366 = vld [vmem:[%s1 + $0x4] sm:$0xf]
        %v367 = vld [vmem:[%s329] sm:$0xf]
        %v368 = vld [vmem:[%s329 + $0x4] sm:$0xf]
        %v369 = vld [vmem:[%s329 + $0x8] sm:$0xf]
        %v370 = vld [vmem:[%s329 + $0xc] sm:$0xf]
        %v371 = vld [vmem:[%s2] sm:$0xff]
        %v372 = vld [vmem:[%s2 + $0x8] sm:$0xff]
        %374 = vset.pattern.permute.xlu0 0
        %375 = vperm.xlu0 %374, %v371
        %v376 = vpop.permute.xlu0 %375
        %379 = vset.pattern.permute.xlu0 0
        %380 = vperm.xlu0 %379, %v372
        %v381 = vpop.permute.xlu0 %380
        %v385 = vunpack.c.l.b16 %v365
        %v386 = vunpack.c.l.b16 %v366
        %v387 = vpack.c.b16 %v386, %v385
        %v392 = vunpack.c.l.b16 %v367
        %v393 = vunpack.c.l.b16 %v368
        %v394 = vunpack.c.l.b16 %v369
        %v395 = vunpack.c.l.b16 %v370
        %v396 = vpack.c.b16 %v393, %v392
        %v397 = vpack.c.b16 %v395, %v394
        %vm400 = vcmask 261120
        %v402 = vsel %vm400, %v387, 0
        %404 = vmatprep.subr.bf16.mxu0 0
        %405 = vmatpush1.bf16.msra.mxu0 %v396
        %406 = vmatprep.subr.bf16.mxu0 0
        %407 = vmatpush1.bf16.msra.mxu0 %v397
        %408 = vmatprep.subr.bf16.mxu0 0
        %409 = vmatpush1.bf16.msra.mxu0 0
        %410 = vmatprep.subr.bf16.mxu0 0
        %411 = vmatpush1.bf16.msra.mxu0 0
        %412 = vmatprep.subr.bf16.mxu0 0
        %413 = vmatpush1.bf16.msra.mxu0 0
        %414 = vmatprep.subr.bf16.mxu0 0
        %415 = vmatpush1.bf16.msra.mxu0 0
        %416 = vmatprep.subr.bf16.mxu0 0
        %417 = vmatpush1.bf16.msra.mxu0 0
        %418 = vmatprep.subr.bf16.mxu0 0
        %419 = vmatpush1.bf16.msra.mxu0 0
        %420 = vmatprep.subr.bf16.mxu0 0
        %421 = vmatpush1.bf16.msra.mxu0 0
        %422 = vmatprep.subr.bf16.mxu0 0
        %423 = vmatpush1.bf16.msra.mxu0 0
        %424 = vmatprep.subr.bf16.mxu0 0
        %425 = vmatpush1.bf16.msra.mxu0 0
        %426 = vmatprep.subr.bf16.mxu0 0
        %427 = vmatpush1.bf16.msra.mxu0 0
        %428 = vmatprep.subr.bf16.mxu0 0
        %429 = vmatpush1.bf16.msra.mxu0 0
        %430 = vmatprep.subr.bf16.mxu0 0
        %431 = vmatpush1.bf16.msra.mxu0 0
        %432 = vmatprep.subr.bf16.mxu0 0
        %433 = vmatpush1.bf16.msra.mxu0 0
        %434 = vmatprep.subr.bf16.mxu0 0
        %435 = vmatpush1.bf16.msra.mxu0 0
        %436 = vmatprep.mubr.bf16.mxu0 0
        %437 = vmatmul.mubr.bf16.gmra.mrb[0].mxu0 %v402
        %v438 = vpop.f32.mrb[0].mxu0
        %v439 = vadd.f32 %v376, %v438
        %v440 = vpop.f32.mrb[0].mxu0
        %v441 = vpop.f32.mrb[0].mxu0
        %v442 = vadd.f32 %v381, %v441
        %v443 = vpop.f32.mrb[0].mxu0
        %444 = vdwg.mxu0
        %v445 = vmax.f32 %v439, 0.0
        %v446 = vmax.f32 %v442, 0.0
        %v447 = vld [vmem:[%s336] sm:$0xf]
        %v448 = vld [vmem:[%s336 + $0x4] sm:$0xf]
        %v449 = vld [vmem:[%s336 + $0x8] sm:$0xf]
        %v450 = vld [vmem:[%s336 + $0xc] sm:$0xf]
        %v451 = vunpack.c.l.bf16 %v447
        %v452 = vunpack.c.l.bf16 %v448
        %v453 = vunpack.c.l.bf16 %v449
        %v454 = vunpack.c.l.bf16 %v450
        %v455 = vmul.f32 %v445, %v451
        %v456 = vmul.f32 %v446, %v452
        %v457 = vmul.f32 %v445, %v453
        %v458 = vmul.f32 %v446, %v454
        %459 = vadd.xlane.f32.xlu0 %v455
        %v460 = vpop.xlane.xlu0 %459
        %461 = vadd.xlane.f32.xlu0 %v456
        %v462 = vpop.xlane.xlu0 %461
        %463 = vadd.xlane.f32.xlu0 %v457
        %v464 = vpop.xlane.xlu0 %463
        %465 = vadd.xlane.f32.xlu0 %v458
        %v466 = vpop.xlane.xlu0 %465
        %v471 = vlaneseq
        %v472 = vand.u32 %v471, 127
        %v473 = vlaneseq
        %v474 = vshrl.u32 %v473, 7
        %v475 = vsub.s32 %v472, %v474
        %v476 = vrot.slane %v460, %v475
        %v477 = vadd.s32 %v472, 4294967288
        %v478 = vlaneseq
        %v479 = vshrl.u32 %v478, 7
        %v480 = vsub.s32 %v477, %v479
        %v481 = vrot.slane %v462, %v480
        %vm482 = vcmask 130112
        %v483 = vsel %vm482, %v481, %v476
        %v484 = vlaneseq
        %v485 = vshrl.u32 %v484, 7
        %v486 = vsub.s32 %v472, %v485
        %v487 = vrot.slane %v464, %v486
        %v488 = vlaneseq
        %v489 = vshrl.u32 %v488, 7
        %v490 = vsub.s32 %v477, %v489
        %v491 = vrot.slane %v466, %v490
        %v492 = vsel %vm482, %v491, %v487
        %vm493 = vcmask 1041409
        %v494 = vsel %vm493, %v492, %v483
        %vm496 = vcmask 123904
        %v497 = vsel %vm496, %v494, 0.0
        %498 = vadd.xlane.f32.xlu0 %v497
        %v499 = vpop.xlane.xlu0 %498
        %p500 = scmp.eq.s32.totalorder %s24, 0
        // Predicated region
        $region123: #{simple_net_forward.1} parent=113 // pred_check
          %p501 = pneg %p500
        $region124: #{simple_net_forward.1} parent=113 // pred_check_branch
          %503 = sbr.rel (%p501) target = $region126
        $region125: #{simple_net_forward.1} parent=113 // pred_region
          %v504 = vld [vmem:[%s4] sm:$0x1]
          %vm505 = vcmask 8192
          %506 = vst.msk [vmem:[%s363] sm:$0x1] %vm505, %v504
        $region126: #{simple_net_forward.1} parent=113 // pred_fallthru
          _
        %v507 = vld [vmem:[%s363] sm:$0x1]
        %v509 = vlaneseq
        %v510 = vshrl.u32 %v509, 7
        %v511 = vsub.s32 0, %v510
        %v512 = vrot.slane %v499, %v511
        %v513 = vlaneseq
        %v514 = vshrl.u32 %v513, 7
        %v515 = vsub.s32 1, %v514
        %v516 = vrot.slane %v499, %v515
        %v517 = vcombine.low %v512, %v516
        %v519 = vunpack.c.l.s4 1966171168
        %v520 = vunpack.c.0.s8 %v519
        %v521 = vlaneseq
        %v522 = vshrl.u32 %v521, 7
        %v523 = vsub.s32 %v520, %v522
        %v524 = vrot.slane %v517, %v523
        %v526 = vunpack.c.l.s4 1966171168
        %v527 = vunpack.c.0.s8 %v526
        %v528 = vlaneseq
        %v529 = vshrl.u32 %v528, 7
        %v530 = vsub.s32 %v527, %v529
        %v531 = vrot.slane %v524, %v530
        %532 = vset.pattern.permute.xlu0 0
        %533 = vperm.xlu0 %532, %v531
        %v534 = vpop.permute.xlu0 %533
        %v535 = vlaneseq
        %v536 = vshrl.u32 %v535, 7
        %v537 = vsub.s32 %v472, %v536
        %v538 = vrot.slane %v534, %v537
        %v540 = vunpack.c.l.s4 1966171168
        %v541 = vunpack.c.0.s8 %v540
        %v542 = vlaneseq
        %v543 = vshrl.u32 %v542, 7
        %v544 = vsub.s32 %v541, %v543
        %v545 = vrot.slane %v538, %v544
        %v547 = vunpack.c.l.s4 1966171168
        %v548 = vunpack.c.0.s8 %v547
        %v549 = vlaneseq
        %v550 = vshrl.u32 %v549, 7
        %v551 = vsub.s32 %v548, %v550
        %v552 = vrot.slane %v545, %v551
        %v554 = vadd.f32 %v507, %v552
        %vm555 = vcmask 8192
        %556 = vst.msk [vmem:[%s363] sm:$0x1] %vm555, %v554
        %s557 = sand.u32 %s156, 1
        %s558 = scalar_lea.sflag [#allocation5], %s557
        %s559 = sand.u32 %s156, 1
        %s560 = scalar_lea.vmem [#allocation4], %s559
        // Predicated region
        $region127: #{simple_net_forward.1} parent=113 // pred_check
          %p561 = pneg %p166
        $region128: #{simple_net_forward.1} parent=113 // pred_check_branch
          %563 = sbr.rel (%p561) target = $region130
        $region129: #{simple_net_forward.1} parent=113 // pred_region
          %s565 = ssub.s32 16, 16
          %566 = vsyncadd %s558, %s565
          %s567 = smul.addr %s23, 16
          %s568 = scalar_lea.hbm %s5, %s567
          %s570 = sshll.u32 %s560, 4
          %s571 = int_to_ptr.vmem [resolvable:$true] %s570
          %573 = dma.vmem_to_hbm [thread:$0]  %s571, 16, %s568, %s558
        $region130: #{simple_net_forward.1} parent=113 // pred_fallthru
          _
      $region114: #{simple_net_forward.1} parent=5 // pred_fallthru
        _
      %p574 = scmp.le.s32.totalorder 2, %s14
      // Predicated region
      $region131: #{simple_net_forward.1} parent=5 // pred_check
        %p575 = pneg %p574
      $region132: #{simple_net_forward.1} parent=5 // pred_check_branch
        %577 = sbr.rel (%p575) target = $region134
      $region133: #{simple_net_forward.1} parent=5 // pred_region
        %s578 = ssub.s32 %s14, 2
        // Predicated region
        $region135: #{simple_net_forward.1} parent=133 // pred_check
          %p579 = pneg %p172
        $region136: #{simple_net_forward.1} parent=133 // pred_check_branch
          %581 = sbr.rel (%p579) target = $region138
        $region137: #{simple_net_forward.1} parent=133 // pred_region
          %s582 = sand.u32 %s157, 1
          %s583 = scalar_lea.sflag [#allocation5], %s582
          %s584 = sand.u32 %s157, 1
          %s585 = scalar_lea.vmem [#allocation4], %s584
          %586 = dma.done %s583, 16
        $region138: #{simple_net_forward.1} parent=133 // pred_fallthru
          _
      $region134: #{simple_net_forward.1} parent=5 // pred_fallthru
        _
    $region6: #{simple_net_forward.1} parent=1 // loop_footer
      %s18 = sadd.s32 1, %s14
    $region7: #{simple_net_forward.1} parent=1 // loop_footer_branch
      %13 = sbr.rel target = $region3
    $region8: #{simple_net_forward.1} parent=1 // loop_exit
      _
    %587 = vsyncpa [#allocation5], 1
    %s588 = scalar_lea.sflag [#allocation5], 1
    %589 = vsyncpa %s588, 1

</llo_original>
